<compile_context>
chip_gen: v5e
topology: v5e:2x2
jax: 0.10.0
libtpu: 0.0.40
codegen_flags: <defaults>
</compile_context>

<pallas_src>
import functools

import jax
import jax.numpy as jnp
import numpy as np
from jax.experimental import pallas as pl
from jax.experimental.pallas import tpu as pltpu


def _round_up(x: int, m: int) -> int:
    return (x + m - 1) // m * m


# --------------------------------------------------------------------------
# Kernel: fused bottom MLP (all layers) on one batch tile.
# --------------------------------------------------------------------------
def _fused_mlp_kernel(x_ref, *refs, num_layers: int):
    """x_ref : [TM, K0] f32 batch tile (true, un-padded feature width).
    refs  : (w0, b0, ..., w{L-1}, b{L-1}, out_ref)
            w_l    : [Kin_l, Nout_l_pad] bf16, VMEM-resident (constant block idx)
            b_l    : [1, Nout_l_pad] f32
            out_ref: [TM, Nout_last_pad] f32 (lane-dense, unmasked stores)
    """
    out_ref = refs[-1]
    wb = refs[:-1]

    h = x_ref[...].astype(jnp.bfloat16)        # cast in VMEM (no extra HBM pass)
    acc = None
    for l in range(num_layers):                # unrolled at trace time
        w = wb[2 * l][...]                     # bf16 [Kin, Npad]
        b = wb[2 * l + 1][...]                 # f32  [1,  Npad]
        acc = jnp.dot(h, w, preferred_element_type=jnp.float32)   # MXU, f32 acc
        acc = jnp.maximum(acc + b, 0.0)        # fused bias + ReLU in f32 (VPU)
        if l + 1 < num_layers:
            h = acc.astype(jnp.bfloat16)       # bf16 activation feeds next matmul
    out_ref[...] = acc.astype(out_ref.dtype)


# --------------------------------------------------------------------------
# One-time parameter prep (hoisted out of the forward hot path).
# --------------------------------------------------------------------------
def prepare_params(params, in_features):
    """Transpose torch-layout [out,in] weights to [in,out], zero-pad the out dim
    (and the in dim of layers >= 1) to 128 lanes, cast W to bf16 (biases stay
    f32 for the f32 epilogue).  Padded weight rows/cols and bias lanes are zero,
    so pad lanes stay exactly zero through every ReLU and are sliced off once
    at the very end.
    NOTE: this zero-propagation argument relies on the activation satisfying
    f(0) == 0 (ReLU); re-derive it if a sigmoid head is ever reached.
    """
    dims = (int(in_features),) + tuple(int(W.shape[0]) for W, _ in params)
    in_dims = (dims[0],) + tuple(_round_up(d, 128) for d in dims[1:-1])
    out_dims = tuple(_round_up(d, 128) for d in dims[1:])
    flat = []
    for l, (W, b) in enumerate(params):
        kin, kout = dims[l], dims[l + 1]
        pk, pn = in_dims[l], out_dims[l]
        W = jnp.asarray(W, jnp.float32)
        b = jnp.asarray(b, jnp.float32)
        w_p = jnp.zeros((pk, pn), jnp.float32).at[:kin, :kout].set(W.T)
        b_p = jnp.zeros((1, pn), jnp.float32).at[:, :kout].set(b[None, :])
        flat.append(w_p.astype(jnp.bfloat16))
        flat.append(b_p)
    return {"flat": tuple(flat), "dims": dims, "in_dims": in_dims, "out_dims": out_dims}


# --------------------------------------------------------------------------
# Per-generation VMEM budget + adaptive batch tile.
# --------------------------------------------------------------------------
def _vmem_limit_bytes():
    """v5e/v6e (128 MiB VMEM): ~100 MiB; v7x-like (64 MiB / TC): 48 MiB."""
    try:
        cap = int(pltpu.get_tpu_info().vmem_capacity_bytes)
    except Exception:
        cap = 64 * 1024 * 1024
    if cap >= 128 * 1024 * 1024:
        return 100 * 1024 * 1024
    return 48 * 1024 * 1024


def _estimate_vmem_bytes(tm, dims, in_dims, out_dims):
    """Conservative footprint: weights (assume double-buffered) + biases +
    double-buffered x/out tiles + widest intermediate activation."""
    L = len(out_dims)
    w = sum(in_dims[l] * out_dims[l] * 2 + out_dims[l] * 4 for l in range(L))
    x_tile = tm * dims[0] * 4
    out_tile = tm * out_dims[-1] * 4
    act = tm * max(out_dims) * 6          # f32 acc + bf16 copy of widest layer
    return 2 * w + 2 * (x_tile + out_tile) + act


def _pick_tm(B, dims, in_dims, out_dims, tm_max, vmem_limit):
    """Adaptive batch tile: no over-padding for tiny batches, >= 2 grid steps
    whenever B allows (v7x megacore + pipelining), VMEM-budget guard."""
    tm = max(8, min(tm_max, _round_up(B, 8)))
    if _round_up(B, 8) > 8 and pl.cdiv(B, tm) < 2:
        tm = max(8, _round_up(pl.cdiv(B, 2), 8))
    while tm > 8 and _estimate_vmem_bytes(tm, dims, in_dims, out_dims) > 0.6 * vmem_limit:
        tm = max(8, _round_up(tm // 2, 8))
    # TODO(synk): if even tm=8 exceeds the budget (very wide layers on v7x),
    # split the layer stack across two pallas_calls instead of fusing fully.
    return tm


# --------------------------------------------------------------------------
# Cached pallas_call builder.
# --------------------------------------------------------------------------
@functools.lru_cache(maxsize=None)
def _build_mlp_call(batch, tm, dims, in_dims, out_dims, single_buffer, vmem_limit):
    L = len(out_dims)
    grid = (pl.cdiv(batch, tm),)

    def _resident_spec(shape):
        # Constant block index -> stays resident in VMEM across the whole grid.
        if single_buffer:
            # Never re-DMA'd, so one buffer suffices (halves resident-weight VMEM).
            return pl.BlockSpec(shape, lambda i: (0, 0),
                                pipeline_mode=pl.Buffered(buffer_count=1))
        return pl.BlockSpec(shape, lambda i: (0, 0))

    in_specs = [pl.BlockSpec((tm, dims[0]), lambda i: (i, 0))]      # x streams
    for l in range(L):
        in_specs.append(_resident_spec((in_dims[l], out_dims[l])))  # W_l
        in_specs.append(_resident_spec((1, out_dims[l])))           # b_l

    out_specs = pl.BlockSpec((tm, out_dims[-1]), lambda i: (i, 0))  # lane-dense
    out_shape = jax.ShapeDtypeStruct((batch, out_dims[-1]), jnp.float32)

    kernel = functools.partial(_fused_mlp_kernel, num_layers=L)
    return pl.pallas_call(
        kernel,
        grid=grid,
        in_specs=in_specs,
        out_specs=out_specs,
        out_shape=out_shape,
        compiler_params=pltpu.CompilerParams(
            dimension_semantics=("parallel",),     # batch tiles are independent
            vmem_limit_bytes=vmem_limit,
        ),
    )


_WEIGHT_SINGLE_BUFFER_OK = None   # memoized: does this JAX accept pl.Buffered(1)?


# --------------------------------------------------------------------------
# Forward pass (== Net.forward).
# --------------------------------------------------------------------------
def bottom_mlp_forward(dense_x, prepared, *, tm_max=512):
    """dense_x: [B, ln[0]] f32; prepared: output of prepare_params().
    Returns [B, ln[-1]] f32, matching torch's apply_mlp(dense_x, bot_l)."""
    global _WEIGHT_SINGLE_BUFFER_OK
    B, K0 = dense_x.shape
    dims, in_dims, out_dims = prepared["dims"], prepared["in_dims"], prepared["out_dims"]
    assert K0 == dims[0], (K0, dims)

    vmem_limit = _vmem_limit_bytes()
    tm = _pick_tm(B, dims, in_dims, out_dims, tm_max, vmem_limit)

    modes = (True, False) if _WEIGHT_SINGLE_BUFFER_OK is None else (_WEIGHT_SINGLE_BUFFER_OK,)
    last_err = None
    for single_buffer in modes:
        try:
            call = _build_mlp_call(B, tm, dims, in_dims, out_dims, single_buffer, vmem_limit)
            y = call(dense_x, *prepared["flat"])
            if _WEIGHT_SINGLE_BUFFER_OK is None:
                jax.block_until_ready(y)   # surface compile errors so fallback can kick in
            _WEIGHT_SINGLE_BUFFER_OK = single_buffer
            # Rows are already exactly B; only the 128-lane pad is sliced off.
            # Consumers that can mask pad lanes themselves should skip this slice.
            return y[:, : dims[-1]]
        except Exception as e:   # fall back to default double-buffered weight specs
            last_err = e
    raise last_err


# --------------------------------------------------------------------------
# Parameter construction matching the torch init (W ~ N(0, sqrt(2/(m+n))),
# b ~ N(0, sqrt(1/m)), torch Linear layout [out, in]).
# --------------------------------------------------------------------------
def make_mlp_params(key, ln):
    params = []
    for i in range(len(ln) - 1):
        n, m = int(ln[i]), int(ln[i + 1])
        key, kw, kb = jax.random.split(key, 3)
        W = jax.random.normal(kw, (m, n), jnp.float32) * np.sqrt(2.0 / (m + n))
        b = jax.random.normal(kb, (m,), jnp.float32) * np.sqrt(1.0 / m)
        params.append((W, b))
    return params


# Pure-JAX references: same bf16 numerics as the kernel, and full f32.
def reference_mlp_bf16(x, params):
    h = x.astype(jnp.bfloat16)
    out = None
    for l, (W, b) in enumerate(params):
        out = jnp.dot(h, W.T.astype(jnp.bfloat16), preferred_element_type=jnp.float32)
        out = jnp.maximum(out + b[None, :], 0.0)
        if l + 1 < len(params):
            h = out.astype(jnp.bfloat16)
    return out


def reference_mlp_f32(x, params):
    h = x
    for W, b in params:
        h = jnp.maximum(jnp.dot(h, W.T) + b[None, :], 0.0)
    return h


if __name__ == "__main__":
    key = jax.random.PRNGKey(0)

    # Small DLRM-style bottom MLP: ln = (13, 64, 32).  sigmoid_layer = len(ln)-1
    # is never reached in create_mlp's loop, so every activation is ReLU.
    ln = (13, 64, 32)

    key, kp = jax.random.split(key)
    params = make_mlp_params(kp, ln)
    prepared = prepare_params(params, in_features=ln[0])   # one-time prep, reused

    for batch in (33, 16):        # odd batch exercises torch's pad-to-even path
        key, kx = jax.random.split(key)
        dense_x = jax.random.normal(kx, (batch, ln[0]), jnp.float32)

        y = jax.block_until_ready(bottom_mlp_forward(dense_x, prepared))
        assert y.shape == (batch, ln[-1]), y.shape

        ref_same = jax.block_until_ready(reference_mlp_bf16(dense_x, params))
        ref_f32 = jax.block_until_ready(reference_mlp_f32(dense_x, params))

        if not np.allclose(np.asarray(y), np.asarray(ref_same), rtol=2e-3, atol=2e-3):
            max_err = float(jnp.max(jnp.abs(y - ref_same)))
            raise AssertionError(
                f"batch={batch}: mismatch vs bf16-numerics reference, max abs err={max_err}")
        if not np.allclose(np.asarray(y), np.asarray(ref_f32), rtol=3e-2, atol=3e-2):
            max_err = float(jnp.max(jnp.abs(y - ref_f32)))
            raise AssertionError(
                f"batch={batch}: mismatch vs f32 reference, max abs err={max_err}")

    print("KERNEL_OK")
</pallas_src>

<mosaic_0001>
module attributes {stable_mosaic.version = 11 : i64} {
  func.func @_fused_mlp_kernel(%arg0: i32, %arg1: memref<24x13xf32, #tpu.memory_space<vmem>>, %arg2: memref<13x128xbf16, #tpu.memory_space<vmem>>, %arg3: memref<1x128xf32, #tpu.memory_space<vmem>>, %arg4: memref<128x128xbf16, #tpu.memory_space<vmem>>, %arg5: memref<1x128xf32, #tpu.memory_space<vmem>>, %arg6: memref<24x128xf32, #tpu.memory_space<vmem>>) attributes {dimension_semantics = [#tpu.dimension_semantics<parallel>], iteration_bounds = array<i64: 2>, scalar_prefetch = 0 : i64, scratch_operands = 0 : i64, tpu.core_type = #tpu.core_type<tc>, window_params = [{transform_indices = @transform_0, window_bounds = array<i64: 24, 13>}, {pipeline_mode = #tpu.pipeline_mode<synchronous>, transform_indices = @transform_1, window_bounds = array<i64: 13, 128>}, {pipeline_mode = #tpu.pipeline_mode<synchronous>, transform_indices = @transform_2, window_bounds = array<i64: 1, 128>}, {pipeline_mode = #tpu.pipeline_mode<synchronous>, transform_indices = @transform_3, window_bounds = array<i64: 128, 128>}, {pipeline_mode = #tpu.pipeline_mode<synchronous>, transform_indices = @transform_4, window_bounds = array<i64: 1, 128>}, {transform_indices = @transform_5, window_bounds = array<i64: 24, 128>}]} {
    %c0 = arith.constant 0 : index
    %c0_0 = arith.constant 0 : index
    %0 = vector.load %arg1[%c0, %c0_0] : memref<24x13xf32, #tpu.memory_space<vmem>>, vector<24x13xf32>
    %1 = arith.truncf %0 : vector<24x13xf32> to vector<24x13xbf16>
    %c0_1 = arith.constant 0 : index
    %c0_2 = arith.constant 0 : index
    %2 = vector.load %arg2[%c0_1, %c0_2] : memref<13x128xbf16, #tpu.memory_space<vmem>>, vector<13x128xbf16>
    %c0_3 = arith.constant 0 : index
    %c0_4 = arith.constant 0 : index
    %3 = vector.load %arg3[%c0_3, %c0_4] : memref<1x128xf32, #tpu.memory_space<vmem>>, vector<1x128xf32>
    %cst = arith.constant dense<0.000000e+00> : vector<24x128xf32>
    %4 = tpu.matmul %1, %2, %cst {dimension_numbers = #tpu.dot_dimension_numbers<[1], [0], [0], [1], [0, 0, 1, 1], [], []>} : vector<24x13xbf16>, vector<13x128xbf16>, vector<24x128xf32> -> vector<24x128xf32>
    %5 = vector.broadcast %3 : vector<1x128xf32> to vector<24x128xf32>
    %6 = arith.addf %4, %5 : vector<24x128xf32>
    %cst_5 = arith.constant 0.000000e+00 : f32
    %7 = vector.broadcast %cst_5 : f32 to vector<24x128xf32>
    %8 = arith.maximumf %6, %7 : vector<24x128xf32>
    %9 = arith.truncf %8 : vector<24x128xf32> to vector<24x128xbf16>
    %c0_6 = arith.constant 0 : index
    %c0_7 = arith.constant 0 : index
    %10 = vector.load %arg4[%c0_6, %c0_7] : memref<128x128xbf16, #tpu.memory_space<vmem>>, vector<128x128xbf16>
    %c0_8 = arith.constant 0 : index
    %c0_9 = arith.constant 0 : index
    %11 = vector.load %arg5[%c0_8, %c0_9] : memref<1x128xf32, #tpu.memory_space<vmem>>, vector<1x128xf32>
    %cst_10 = arith.constant dense<0.000000e+00> : vector<24x128xf32>
    %12 = tpu.matmul %9, %10, %cst_10 {dimension_numbers = #tpu.dot_dimension_numbers<[1], [0], [0], [1], [0, 0, 1, 1], [], []>} : vector<24x128xbf16>, vector<128x128xbf16>, vector<24x128xf32> -> vector<24x128xf32>
    %13 = vector.broadcast %11 : vector<1x128xf32> to vector<24x128xf32>
    %14 = arith.addf %12, %13 : vector<24x128xf32>
    %cst_11 = arith.constant 0.000000e+00 : f32
    %15 = vector.broadcast %cst_11 : f32 to vector<24x128xf32>
    %16 = arith.maximumf %14, %15 : vector<24x128xf32>
    %c0_12 = arith.constant 0 : index
    %c0_13 = arith.constant 0 : index
    %17 = vector.load %arg6[%c0_12, %c0_13] : memref<24x128xf32, #tpu.memory_space<vmem>>, vector<24x128xf32>
    tpu.vector_store %arg6[%c0_12, %c0_13], %16 {strides = array<i32>} : memref<24x128xf32, #tpu.memory_space<vmem>>, vector<24x128xf32>,
    return
  }
  func.func @transform_0(%arg0: i32) -> (i32, i32) {
    %c0_i32 = arith.constant 0 : i32
    %c0_i32_0 = arith.constant 0 : i32
    return %arg0, %c0_i32 : i32, i32
  }
  func.func @transform_1(%arg0: i32) -> (i32, i32) {
    %c0_i32 = arith.constant 0 : i32
    %c0_i32_0 = arith.constant 0 : i32
    %c0_i32_1 = arith.constant 0 : i32
    return %c0_i32, %c0_i32_0 : i32, i32
  }
  func.func @transform_2(%arg0: i32) -> (i32, i32) {
    %c0_i32 = arith.constant 0 : i32
    %c0_i32_0 = arith.constant 0 : i32
    %c0_i32_1 = arith.constant 0 : i32
    return %c0_i32, %c0_i32_0 : i32, i32
  }
  func.func @transform_3(%arg0: i32) -> (i32, i32) {
    %c0_i32 = arith.constant 0 : i32
    %c0_i32_0 = arith.constant 0 : i32
    %c0_i32_1 = arith.constant 0 : i32
    return %c0_i32, %c0_i32_0 : i32, i32
  }
  func.func @transform_4(%arg0: i32) -> (i32, i32) {
    %c0_i32 = arith.constant 0 : i32
    %c0_i32_0 = arith.constant 0 : i32
    %c0_i32_1 = arith.constant 0 : i32
    return %c0_i32, %c0_i32_0 : i32, i32
  }
  func.func @transform_5(%arg0: i32) -> (i32, i32) {
    %c0_i32 = arith.constant 0 : i32
    %c0_i32_0 = arith.constant 0 : i32
    return %arg0, %c0_i32 : i32, i32
  }
}

module attributes {stable_mosaic.version = 11 : i64} {
  func.func @_fused_mlp_kernel(%arg0: i32, %arg1: memref<24x13xf32, #tpu.memory_space<vmem>>, %arg2: memref<13x128xbf16, #tpu.memory_space<vmem>>, %arg3: memref<1x128xf32, #tpu.memory_space<vmem>>, %arg4: memref<128x128xbf16, #tpu.memory_space<vmem>>, %arg5: memref<1x128xf32, #tpu.memory_space<vmem>>, %arg6: memref<24x128xf32, #tpu.memory_space<vmem>>) attributes {dimension_semantics = [#tpu.dimension_semantics<parallel>], iteration_bounds = array<i64: 2>, scalar_prefetch = 0 : i64, scratch_operands = 0 : i64, tpu.core_type = #tpu.core_type<tc>, window_params = [{transform_indices = @transform_0, window_bounds = array<i64: 24, 13>}, {pipeline_mode = #tpu.pipeline_mode<synchronous>, transform_indices = @transform_1, window_bounds = array<i64: 13, 128>}, {pipeline_mode = #tpu.pipeline_mode<synchronous>, transform_indices = @transform_2, window_bounds = array<i64: 1, 128>}, {pipeline_mode = #tpu.pipeline_mode<synchronous>, transform_indices = @transform_3, window_bounds = array<i64: 128, 128>}, {pipeline_mode = #tpu.pipeline_mode<synchronous>, transform_indices = @transform_4, window_bounds = array<i64: 1, 128>}, {transform_indices = @transform_5, window_bounds = array<i64: 24, 128>}]} {
    %c0 = arith.constant 0 : index
    %c0_0 = arith.constant 0 : index
    %0 = vector.load %arg1[%c0, %c0_0] : memref<24x13xf32, #tpu.memory_space<vmem>>, vector<24x13xf32>
    %1 = arith.truncf %0 : vector<24x13xf32> to vector<24x13xbf16>
    %c0_1 = arith.constant 0 : index
    %c0_2 = arith.constant 0 : index
    %2 = vector.load %arg2[%c0_1, %c0_2] : memref<13x128xbf16, #tpu.memory_space<vmem>>, vector<13x128xbf16>
    %c0_3 = arith.constant 0 : index
    %c0_4 = arith.constant 0 : index
    %3 = vector.load %arg3[%c0_3, %c0_4] : memref<1x128xf32, #tpu.memory_space<vmem>>, vector<1x128xf32>
    %cst = arith.constant dense<0.000000e+00> : vector<24x128xf32>
    %4 = tpu.matmul %1, %2, %cst {dimension_numbers = #tpu.dot_dimension_numbers<[1], [0], [0], [1], [0, 0, 1, 1], [], []>} : vector<24x13xbf16>, vector<13x128xbf16>, vector<24x128xf32> -> vector<24x128xf32>
    %5 = vector.broadcast %3 : vector<1x128xf32> to vector<24x128xf32>
    %6 = arith.addf %4, %5 : vector<24x128xf32>
    %cst_5 = arith.constant 0.000000e+00 : f32
    %7 = vector.broadcast %cst_5 : f32 to vector<24x128xf32>
    %8 = arith.maximumf %6, %7 : vector<24x128xf32>
    %9 = arith.truncf %8 : vector<24x128xf32> to vector<24x128xbf16>
    %c0_6 = arith.constant 0 : index
    %c0_7 = arith.constant 0 : index
    %10 = vector.load %arg4[%c0_6, %c0_7] : memref<128x128xbf16, #tpu.memory_space<vmem>>, vector<128x128xbf16>
    %c0_8 = arith.constant 0 : index
    %c0_9 = arith.constant 0 : index
    %11 = vector.load %arg5[%c0_8, %c0_9] : memref<1x128xf32, #tpu.memory_space<vmem>>, vector<1x128xf32>
    %cst_10 = arith.constant dense<0.000000e+00> : vector<24x128xf32>
    %12 = tpu.matmul %9, %10, %cst_10 {dimension_numbers = #tpu.dot_dimension_numbers<[1], [0], [0], [1], [0, 0, 1, 1], [], []>} : vector<24x128xbf16>, vector<128x128xbf16>, vector<24x128xf32> -> vector<24x128xf32>
    %13 = vector.broadcast %11 : vector<1x128xf32> to vector<24x128xf32>
    %14 = arith.addf %12, %13 : vector<24x128xf32>
    %cst_11 = arith.constant 0.000000e+00 : f32
    %15 = vector.broadcast %cst_11 : f32 to vector<24x128xf32>
    %16 = arith.maximumf %14, %15 : vector<24x128xf32>
    %c0_12 = arith.constant 0 : index
    %c0_13 = arith.constant 0 : index
    %17 = vector.load %arg6[%c0_12, %c0_13] : memref<24x128xf32, #tpu.memory_space<vmem>>, vector<24x128xf32>
    tpu.vector_store %arg6[%c0_12, %c0_13], %16 {strides = array<i32>} : memref<24x128xf32, #tpu.memory_space<vmem>>, vector<24x128xf32>,
    return
  }
  func.func @transform_0(%arg0: i32) -> (i32, i32) {
    %c0_i32 = arith.constant 0 : i32
    %c0_i32_0 = arith.constant 0 : i32
    return %arg0, %c0_i32 : i32, i32
  }
  func.func @transform_1(%arg0: i32) -> (i32, i32) {
    %c0_i32 = arith.constant 0 : i32
    %c0_i32_0 = arith.constant 0 : i32
    %c0_i32_1 = arith.constant 0 : i32
    return %c0_i32, %c0_i32_0 : i32, i32
  }
  func.func @transform_2(%arg0: i32) -> (i32, i32) {
    %c0_i32 = arith.constant 0 : i32
    %c0_i32_0 = arith.constant 0 : i32
    %c0_i32_1 = arith.constant 0 : i32
    return %c0_i32, %c0_i32_0 : i32, i32
  }
  func.func @transform_3(%arg0: i32) -> (i32, i32) {
    %c0_i32 = arith.constant 0 : i32
    %c0_i32_0 = arith.constant 0 : i32
    %c0_i32_1 = arith.constant 0 : i32
    return %c0_i32, %c0_i32_0 : i32, i32
  }
  func.func @transform_4(%arg0: i32) -> (i32, i32) {
    %c0_i32 = arith.constant 0 : i32
    %c0_i32_0 = arith.constant 0 : i32
    %c0_i32_1 = arith.constant 0 : i32
    return %c0_i32, %c0_i32_0 : i32, i32
  }
  func.func @transform_5(%arg0: i32) -> (i32, i32) {
    %c0_i32 = arith.constant 0 : i32
    %c0_i32_0 = arith.constant 0 : i32
    return %arg0, %c0_i32 : i32, i32
  }
}

</mosaic_0001>

<llo_original>
// kernel: tpu_custom_call.1
$region0: #{tpu_custom_call.1}
  #allocation0 [shape = 'u32[]', space=smem, size = 0x4, offset = 0x4, fixed_abs, tag = 'smem constant byte address 0x4 - core index']
  #allocation1 [shape = 'u32[72,128]{1,0:T(1,128)}', space=vmem, size = 0x9000, scoped, tag = 'internal scratch']
  %s0 = inlined_call_operand.vmem [shape: f32[33,13], index: 0, kind: input, shape index: {}]
  %s1 = inlined_call_operand.vmem [shape: bf16[13,128], index: 1, kind: input, shape index: {}]
  %s2 = inlined_call_operand.vmem [shape: f32[1,128], index: 2, kind: input, shape index: {}]
  %s3 = inlined_call_operand.hbm [shape: bf16[128,128], index: 3, kind: input, shape index: {}]
  %s4 = inlined_call_operand.vmem [shape: f32[1,128], index: 4, kind: input, shape index: {}]
  %s5 = inlined_call_operand.hbm [shape: f32[33,128], index: 5, kind: output, shape index: {}]
  %s6 = sld [smem:[#allocation0]]
  $region57: #{tpu_custom_call.1} parent=0
    _
  %s8 = ssub.s32 1, %s6
  %s9 = scalar_select 0, %s8, %s6
  $region1: #{tpu_custom_call.1} parent=0
    #allocation2 [shape = 'u8[32768]{0}', space=vmem, size = 0x8000, scoped, tag = 'input window, operand 3, single buffered']
    #allocation3 [shape = 's32[2]{0}', space=sflag, size = 0x8, scoped, tag = 'scoped memory for tpu_custom_call.1']
    #allocation4 [shape = 's32[2]{0}', space=sflag, size = 0x8, scoped, tag = 'scoped memory for tpu_custom_call.1']
    #allocation5 [shape = 'u8[24576]{0}', space=vmem, size = 0x6000, scoped, tag = 'output window, operand 0']
    %10 = vsyncpa [#allocation3], 0
    %11 = vsyncpa [#allocation4], 0
    %s12 = scalar_lea.sflag [#allocation4], 1
    %13 = vsyncpa %s12, 0
    loop: start=0, step=1, limit=4
    $region2: #{tpu_custom_call.1} parent=1 // loop_pre_header
      _
    $region3: #{tpu_custom_call.1} parent=1 // loop_header
      %s15 = sphi 0, %s19
      %p16 = scmp.ge.s32.totalorder %s15, 4
      %s25 = sphi 0, %s27
      %s28 = sphi 0, %s25
      %s29 = sphi 0, %s28
      %s45 = sphi 0, %s29
      %s49 = sphi 0, %s49
      %s51 = sphi 0, %s49
      %s52 = sphi 0, %s51
      %s66 = sphi 0, %s52
      %s70 = sphi 0, %s70
      %s72 = sphi 0, %s70
      %s73 = sphi 0, %s72
      %s87 = sphi 0, %s73
      %s91 = sphi 0, %s91
      %s93 = sphi 0, %s91
      %s94 = sphi 0, %s93
      %s108 = sphi 0, %s94
      %s112 = sphi 0, %s112
      %s114 = sphi 0, %s112
      %s115 = sphi 0, %s114
      %s129 = sphi 0, %s115
      %s135 = sphi 0, %s137
      %s138 = sphi 0, %s135
      %s139 = sphi 0, %s138
      %s155 = sphi 0, %s139
    $region4: #{tpu_custom_call.1} parent=1 // loop_header_branch
      %18 = sbr.rel (%p16) target = $region8
    $region5: #{tpu_custom_call.1} parent=1 // loop_body
      %s20 = ssub.s32 %s15, 1
      %s21 = ssub.s32 %s15, 2
      %s22 = sadd.s32 %s15, 1
      %s23 = ssub.s32 %s15, %s22
      %p24 = scmp.eq.s32.totalorder %s23, 0
      %s26 = sadd.s32 %s25, 1
      %s27 = scalar_select %p24, %s25, %s26
      %p30 = pneg %p24
      %p31 = scmp.eq.s32.totalorder %s15, 1
      %p32 = por %p30, %p31
      %p33 = scmp.ne.s32.totalorder %s25, %s28
      %p34 = scmp.eq.s32.totalorder %s15, 0
      %p35 = por %p33, %p34
      %p36 = scmp.ne.s32.totalorder %s25, %s28
      %p37 = scmp.eq.s32.totalorder %s20, 1
      %p38 = por %p36, %p37
      %p39 = scmp.ne.s32.totalorder %s28, %s29
      %p40 = scmp.eq.s32.totalorder %s20, 0
      %p41 = por %p39, %p40
      %p42 = scmp.ne.s32.totalorder %s28, %s29
      %p43 = scmp.eq.s32.totalorder %s21, 1
      %p44 = por %p42, %p43
      %p46 = scmp.ne.s32.totalorder %s29, %s45
      %p47 = scmp.eq.s32.totalorder %s21, 0
      %p48 = por %p46, %p47
      %s50 = sadd.s32 %s49, 1
      %p53 = scmp.eq.s32.totalorder %s15, 1
      %p54 = scmp.ne.s32.totalorder %s49, %s51
      %p55 = scmp.eq.s32.totalorder %s15, 0
      %p56 = por %p54, %p55
      %p57 = scmp.ne.s32.totalorder %s49, %s51
      %p58 = scmp.eq.s32.totalorder %s20, 1
      %p59 = por %p57, %p58
      %p60 = scmp.ne.s32.totalorder %s51, %s52
      %p61 = scmp.eq.s32.totalorder %s20, 0
      %p62 = por %p60, %p61
      %p63 = scmp.ne.s32.totalorder %s51, %s52
      %p64 = scmp.eq.s32.totalorder %s21, 1
      %p65 = por %p63, %p64
      %p67 = scmp.ne.s32.totalorder %s52, %s66
      %p68 = scmp.eq.s32.totalorder %s21, 0
      %p69 = por %p67, %p68
      %s71 = sadd.s32 %s70, 1
      %p74 = scmp.eq.s32.totalorder %s15, 1
      %p75 = scmp.ne.s32.totalorder %s70, %s72
      %p76 = scmp.eq.s32.totalorder %s15, 0
      %p77 = por %p75, %p76
      %p78 = scmp.ne.s32.totalorder %s70, %s72
      %p79 = scmp.eq.s32.totalorder %s20, 1
      %p80 = por %p78, %p79
      %p81 = scmp.ne.s32.totalorder %s72, %s73
      %p82 = scmp.eq.s32.totalorder %s20, 0
      %p83 = por %p81, %p82
      %p84 = scmp.ne.s32.totalorder %s72, %s73
      %p85 = scmp.eq.s32.totalorder %s21, 1
      %p86 = por %p84, %p85
      %p88 = scmp.ne.s32.totalorder %s73, %s87
      %p89 = scmp.eq.s32.totalorder %s21, 0
      %p90 = por %p88, %p89
      %s92 = sadd.s32 %s91, 1
      %p95 = scmp.eq.s32.totalorder %s15, 1
      %p96 = scmp.ne.s32.totalorder %s91, %s93
      %p97 = scmp.eq.s32.totalorder %s15, 0
      %p98 = por %p96, %p97
      %p99 = scmp.ne.s32.totalorder %s91, %s93
      %p100 = scmp.eq.s32.totalorder %s20, 1
      %p101 = por %p99, %p100
      %p102 = scmp.ne.s32.totalorder %s93, %s94
      %p103 = scmp.eq.s32.totalorder %s20, 0
      %p104 = por %p102, %p103
      %p105 = scmp.ne.s32.totalorder %s93, %s94
      %p106 = scmp.eq.s32.totalorder %s21, 1
      %p107 = por %p105, %p106
      %p109 = scmp.ne.s32.totalorder %s94, %s108
      %p110 = scmp.eq.s32.totalorder %s21, 0
      %p111 = por %p109, %p110
      %s113 = sadd.s32 %s112, 1
      %p116 = scmp.eq.s32.totalorder %s15, 1
      %p117 = scmp.ne.s32.totalorder %s112, %s114
      %p118 = scmp.eq.s32.totalorder %s15, 0
      %p119 = por %p117, %p118
      %p120 = scmp.ne.s32.totalorder %s112, %s114
      %p121 = scmp.eq.s32.totalorder %s20, 1
      %p122 = por %p120, %p121
      %p123 = scmp.ne.s32.totalorder %s114, %s115
      %p124 = scmp.eq.s32.totalorder %s20, 0
      %p125 = por %p123, %p124
      %p126 = scmp.ne.s32.totalorder %s114, %s115
      %p127 = scmp.eq.s32.totalorder %s21, 1
      %p128 = por %p126, %p127
      %p130 = scmp.ne.s32.totalorder %s115, %s129
      %p131 = scmp.eq.s32.totalorder %s21, 0
      %p132 = por %p130, %p131
      %s133 = ssub.s32 %s15, %s22
      %p134 = scmp.eq.s32.totalorder %s133, 0
      %s136 = sadd.s32 %s135, 1
      %s137 = scalar_select %p134, %s135, %s136
      %p140 = pneg %p134
      %p141 = scmp.eq.s32.totalorder %s15, 1
      %p142 = por %p140, %p141
      %p143 = scmp.ne.s32.totalorder %s135, %s138
      %p144 = scmp.eq.s32.totalorder %s15, 0
      %p145 = por %p143, %p144
      %p146 = scmp.ne.s32.totalorder %s135, %s138
      %p147 = scmp.eq.s32.totalorder %s20, 1
      %p148 = por %p146, %p147
      %p149 = scmp.ne.s32.totalorder %s138, %s139
      %p150 = scmp.eq.s32.totalorder %s20, 0
      %p151 = por %p149, %p150
      %p152 = scmp.ne.s32.totalorder %s138, %s139
      %p153 = scmp.eq.s32.totalorder %s21, 1
      %p154 = por %p152, %p153
      %p156 = scmp.ne.s32.totalorder %s139, %s155
      %p157 = scmp.eq.s32.totalorder %s21, 0
      %p158 = por %p156, %p157
      %p159 = scmp.le.s32.totalorder 1, %s15
      %p160 = scmp.lt.s32.totalorder %s15, 3
      %p161 = pnand %p159, %p160
      %p162 = pneg %p161
      // Predicated region
      $region9: #{tpu_custom_call.1} parent=5 // pred_check
        _
      $region10: #{tpu_custom_call.1} parent=5 // pred_check_branch
        %164 = sbr.rel (%p161) target = $region12
      $region11: #{tpu_custom_call.1} parent=5 // pred_region
        %s165 = ssub.s32 %s15, 1
        // Predicated region
        $region13: #{tpu_custom_call.1} parent=11 // pred_check
          %p166 = pneg %p62
        $region14: #{tpu_custom_call.1} parent=11 // pred_check_branch
          %168 = sbr.rel (%p166) target = $region16
        $region15: #{tpu_custom_call.1} parent=11 // pred_region
          _
        $region16: #{tpu_custom_call.1} parent=11 // pred_fallthru
          _
        // Predicated region
        $region17: #{tpu_custom_call.1} parent=11 // pred_check
          %p169 = pneg %p83
        $region18: #{tpu_custom_call.1} parent=11 // pred_check_branch
          %171 = sbr.rel (%p169) target = $region20
        $region19: #{tpu_custom_call.1} parent=11 // pred_region
          _
        $region20: #{tpu_custom_call.1} parent=11 // pred_fallthru
          _
        // Predicated region
        $region21: #{tpu_custom_call.1} parent=11 // pred_check
          %p172 = pneg %p104
        $region22: #{tpu_custom_call.1} parent=11 // pred_check_branch
          %174 = sbr.rel (%p172) target = $region24
        $region23: #{tpu_custom_call.1} parent=11 // pred_region
          %176 = vsyncadd [#allocation3], 0
          %s177 = sshll.u32 %s3, 4
          %s178 = int_to_ptr.hbm [resolvable:$true] %s177
          %s179 = sshll.u32 [#allocation2], 4
          %s180 = int_to_ptr.vmem [resolvable:$true] %s179
          %185 = dma.hbm_to_vmem [thread:$0]  %s178, 1024, %s180, [#allocation3], 64, 64, 4
        $region24: #{tpu_custom_call.1} parent=11 // pred_fallthru
          _
        // Predicated region
        $region25: #{tpu_custom_call.1} parent=11 // pred_check
          %p186 = pneg %p125
        $region26: #{tpu_custom_call.1} parent=11 // pred_check_branch
          %188 = sbr.rel (%p186) target = $region28
        $region27: #{tpu_custom_call.1} parent=11 // pred_region
          _
        $region28: #{tpu_custom_call.1} parent=11 // pred_fallthru
          _
      $region12: #{tpu_custom_call.1} parent=5 // pred_fallthru
        _
      %p189 = scmp.lt.s32.totalorder %s15, 2
      // Predicated region
      $region29: #{tpu_custom_call.1} parent=5 // pred_check
        %p190 = pneg %p189
      $region30: #{tpu_custom_call.1} parent=5 // pred_check_branch
        %192 = sbr.rel (%p190) target = $region32
      $region31: #{tpu_custom_call.1} parent=5 // pred_region
        // Predicated region
        $region33: #{tpu_custom_call.1} parent=31 // pred_check
          %p193 = pneg %p35
        $region34: #{tpu_custom_call.1} parent=31 // pred_check_branch
          %195 = sbr.rel (%p193) target = $region36
        $region35: #{tpu_custom_call.1} parent=31 // pred_region
          %s196 = smul.u32 3, %s15
          %s197 = ssub.s32 5, %s196
          %p198 = scmp.lt.s32.totalorder %s197, 3
          %s199 = scalar_select %p198, %s197, 3
          %s200 = smul.u32 8, %s199
          %p201 = scmp.lt.s32.totalorder %s196, 4
          %s202 = scalar_select %p201, %s196, 4
          %s203 = smul.addr %s202, 8
          %s204 = scalar_lea.vmem %s0, %s203
          %s205 = smul.u32 3, %s15
          %s206 = ssub.s32 5, %s205
          %p207 = scmp.lt.s32.totalorder %s206, 3
          %s208 = scalar_select %p207, %s206, 3
          %s209 = smul.u32 8, %s208
        $region36: #{tpu_custom_call.1} parent=31 // pred_fallthru
          _
      $region32: #{tpu_custom_call.1} parent=5 // pred_fallthru
        _
      %p210 = scmp.le.s32.totalorder 1, %s15
      %p211 = scmp.lt.s32.totalorder %s15, 3
      %p212 = pnand %p210, %p211
      %p213 = pneg %p212
      // Predicated region
      $region37: #{tpu_custom_call.1} parent=5 // pred_check
        _
      $region38: #{tpu_custom_call.1} parent=5 // pred_check_branch
        %215 = sbr.rel (%p212) target = $region40
      $region39: #{tpu_custom_call.1} parent=5 // pred_region
        %s216 = ssub.s32 %s15, 1
        // Predicated region
        $region41: #{tpu_custom_call.1} parent=39 // pred_check
          %p217 = pneg %p104
        $region42: #{tpu_custom_call.1} parent=39 // pred_check_branch
          %219 = sbr.rel (%p217) target = $region44
        $region43: #{tpu_custom_call.1} parent=39 // pred_region
          %221 = dma.done [#allocation3], 1024
        $region44: #{tpu_custom_call.1} parent=39 // pred_fallthru
          _
        %s222 = smul.u32 3, %s20
        %s223 = ssub.s32 5, %s222
        %p224 = scmp.lt.s32.totalorder %s223, 3
        %s225 = scalar_select %p224, %s223, 3
        %s226 = smul.u32 8, %s225
        %p227 = scmp.lt.s32.totalorder %s222, 4
        %s228 = scalar_select %p227, %s222, 4
        %s229 = smul.addr %s228, 8
        %s230 = scalar_lea.vmem %s0, %s229
        %p231 = pneg %p41
        %p232 = pneg %p38
        %p233 = pneg %p62
        %p234 = pneg %p59
        %p235 = pneg %p83
        %p236 = pneg %p80
        %p237 = pneg %p104
        %p238 = pneg %p101
        %p239 = pneg %p125
        %p240 = pneg %p122
        %p241 = pneg %p151
        %p242 = pneg %p148
        %s243 = sand.u32 %s138, 1
        %s244 = scalar_lea.sflag [#allocation4], %s243
        %s245 = sand.u32 %s138, 1
        %s246 = smul.addr %s245, 24
        %s247 = scalar_lea.vmem [#allocation5], %s246
        %s248 = smul.u32 3, %s20
        %s249 = ssub.s32 5, %s248
        %p250 = scmp.lt.s32.totalorder %s249, 3
        %s251 = scalar_select %p250, %s249, 3
        %s252 = smul.u32 8, %s251
        %p253 = scmp.lt.s32.totalorder %s248, 4
        %s254 = scalar_select %p253, %s248, 4
        %s255 = smul.addr %s254, 8
        %s256 = scalar_lea.vmem %s0, %s255
        %s257 = smul.u32 3, %s20
        %s258 = ssub.s32 5, %s257
        %p259 = scmp.lt.s32.totalorder %s258, 3
        %s260 = scalar_select %p259, %s258, 3
        %s261 = smul.u32 8, %s260
        %s262 = smul.u32 3, %s20
        %s263 = ssub.s32 5, %s262
        %p264 = scmp.lt.s32.totalorder %s263, 3
        %s265 = scalar_select %p264, %s263, 3
        %s266 = smul.u32 8, %s265
        %v268 = vld [vmem:[%s256] sm:$0xff]
        %v269 = vld [vmem:[%s256 + $0x8] sm:$0xff]
        %v270 = vld [vmem:[%s256 + $0x10] sm:$0xff]
        %v271 = vpack.c.bf16 %v269, %v268
        %v272 = vpack.c.bf16 %v270, %v270
        %v273 = vld [vmem:[%s1] sm:$0xf]
        %v274 = vld [vmem:[%s1 + $0x4] sm:$0x7]
        %v275 = vld [vmem:[%s2] sm:$0x1]
        %v277 = vperm.slane %v275, 0
        %v281 = vunpack.c.l.b16 %v273
        %v282 = vunpack.c.l.b16 %v274
        %v283 = vpack.c.b16 %v282, %v281
        %vm284 = vcmask 105472
        %v286 = vsel %vm284, %v271, 0
        %v289 = vsel %vm284, %v272, 0
        %vm291 = vcmask 1045504
        %vm292 = vcmask 1046528
        %v293 = vsel %vm291, 4294967295, 65535
        %v294 = vsel %vm292, %v293, 0
        %v296 = vand.u32 %v283, %v294
        %298 = vmatpush.bf16.msra.mxu0 0
        %299 = vmatpush.bf16.msra.mxu0 0
        %300 = vmatpush.bf16.msra.mxu0 0
        %301 = vmatpush.bf16.msra.mxu0 0
        %302 = vmatpush.bf16.msra.mxu0 0
        %303 = vmatpush.bf16.msra.mxu0 0
        %304 = vmatpush.bf16.msra.mxu0 0
        %305 = vmatpush.bf16.msra.mxu0 %v296
        %306 = vmatmul.bf16.gmra.mxu0 %v286
        %v307 = vpop.f32.mrf.mxu0
        %v308 = vadd.f32 %v277, %v307
        %v309 = vpop.f32.mrf.mxu0
        %v310 = vadd.f32 %v277, %v309
        %311 = vmatmul.bf16.gmra.mxu0 %v289
        %v312 = vpop.f32.mrf.mxu0
        %v313 = vadd.f32 %v277, %v312
        %v314 = vpop.f32.mrf.mxu0
        %315 = vdwg.mxu0
        %v316 = vmax.f32 %v308, 0.0
        %v317 = vmax.f32 %v310, 0.0
        %v318 = vmax.f32 %v313, 0.0
        %v319 = vpack.c.bf16 %v317, %v316
        %v320 = vpack.c.bf16 %v318, %v318
        %v321 = vld [vmem:[#allocation2] sm:$0xf]
        %v322 = vld [vmem:[#allocation2 + $0x4] sm:$0xf]
        %v323 = vld [vmem:[#allocation2 + $0x8] sm:$0xf]
        %v324 = vld [vmem:[#allocation2 + $0xc] sm:$0xf]
        %v325 = vld [vmem:[#allocation2 + $0x10] sm:$0xf]
        %v326 = vld [vmem:[#allocation2 + $0x14] sm:$0xf]
        %v327 = vld [vmem:[#allocation2 + $0x18] sm:$0xf]
        %v328 = vld [vmem:[#allocation2 + $0x1c] sm:$0xf]
        %v329 = vld [vmem:[#allocation2 + $0x20] sm:$0xf]
        %v330 = vld [vmem:[#allocation2 + $0x24] sm:$0xf]
        %v331 = vld [vmem:[#allocation2 + $0x28] sm:$0xf]
        %v332 = vld [vmem:[#allocation2 + $0x2c] sm:$0xf]
        %v333 = vld [vmem:[#allocation2 + $0x30] sm:$0xf]
        %v334 = vld [vmem:[#allocation2 + $0x34] sm:$0xf]
        %v335 = vld [vmem:[#allocation2 + $0x38] sm:$0xf]
        %v336 = vld [vmem:[#allocation2 + $0x3c] sm:$0xf]
        %v337 = vld [vmem:[%s4] sm:$0x1]
        %v339 = vperm.slane %v337, 0
        %v357 = vunpack.c.l.b16 %v321
        %v358 = vunpack.c.l.b16 %v322
        %v359 = vunpack.c.l.b16 %v323
        %v360 = vunpack.c.l.b16 %v324
        %v361 = vunpack.c.l.b16 %v325
        %v362 = vunpack.c.l.b16 %v326
        %v363 = vunpack.c.l.b16 %v327
        %v364 = vunpack.c.l.b16 %v328
        %v365 = vunpack.c.l.b16 %v329
        %v366 = vunpack.c.l.b16 %v330
        %v367 = vunpack.c.l.b16 %v331
        %v368 = vunpack.c.l.b16 %v332
        %v369 = vunpack.c.l.b16 %v333
        %v370 = vunpack.c.l.b16 %v334
        %v371 = vunpack.c.l.b16 %v335
        %v372 = vunpack.c.l.b16 %v336
        %v373 = vpack.c.b16 %v358, %v357
        %v374 = vpack.c.b16 %v360, %v359
        %v375 = vpack.c.b16 %v362, %v361
        %v376 = vpack.c.b16 %v364, %v363
        %v377 = vpack.c.b16 %v366, %v365
        %v378 = vpack.c.b16 %v368, %v367
        %v379 = vpack.c.b16 %v370, %v369
        %v380 = vpack.c.b16 %v372, %v371
        %389 = vmatpush.bf16.msra.mxu0 %v380
        %390 = vmatpush.bf16.msra.mxu0 %v379
        %391 = vmatpush.bf16.msra.mxu0 %v378
        %392 = vmatpush.bf16.msra.mxu0 %v377
        %393 = vmatpush.bf16.msra.mxu0 %v376
        %394 = vmatpush.bf16.msra.mxu0 %v375
        %395 = vmatpush.bf16.msra.mxu0 %v374
        %396 = vmatpush.bf16.msra.mxu0 %v373
        %397 = vmatmul.bf16.gmra.mxu0 %v319
        %v398 = vpop.f32.mrf.mxu0
        %v399 = vadd.f32 %v339, %v398
        %v400 = vpop.f32.mrf.mxu0
        %v401 = vadd.f32 %v339, %v400
        %402 = vmatmul.bf16.gmra.mxu0 %v320
        %v403 = vpop.f32.mrf.mxu0
        %v404 = vadd.f32 %v339, %v403
        %v405 = vpop.f32.mrf.mxu0
        %406 = vdwg.mxu0
        %v407 = vmax.f32 %v399, 0.0
        %v408 = vmax.f32 %v401, 0.0
        %v409 = vmax.f32 %v404, 0.0
        %410 = vst [vmem:[%s247] sm:$0xff] %v407
        %411 = vst [vmem:[%s247 + $0x8] sm:$0xff] %v408
        %412 = vst [vmem:[%s247 + $0x10] sm:$0xff] %v409
        %s413 = sand.u32 %s138, 1
        %s414 = scalar_lea.sflag [#allocation4], %s413
        %s415 = sand.u32 %s138, 1
        %s416 = smul.addr %s415, 24
        %s417 = scalar_lea.vmem [#allocation5], %s416
        // Predicated region
        $region45: #{tpu_custom_call.1} parent=39 // pred_check
          %p418 = pneg %p148
        $region46: #{tpu_custom_call.1} parent=39 // pred_check_branch
          %420 = sbr.rel (%p418) target = $region48
        $region47: #{tpu_custom_call.1} parent=39 // pred_region
          %s421 = smul.u32 3, %s20
          %s422 = ssub.s32 5, %s421
          %p423 = scmp.lt.s32.totalorder %s422, 3
          %s424 = scalar_select %p423, %s422, 3
          %s425 = smul.u32 8, %s424
          %s426 = ssub.s32 24, %s425
          %s427 = sshll.u32 %s426, 4
          %428 = vsyncadd %s414, %s427
          %p429 = scmp.ne.s32.totalorder 0, %s425
          %s430 = smul.addr %s421, 8
          %s431 = scalar_lea.hbm %s5, %s430
          %s432 = smul.u32 8, %s424
          %s433 = sshll.u32 %s417, 4
          %s434 = int_to_ptr.vmem [resolvable:$true] %s433
          %s435 = sshll.u32 %s431, 4
          %s436 = int_to_ptr.hbm [resolvable:$true] %s435
          %s437 = sshll.u32 %s432, 4
          %441 = dma.vmem_to_hbm [thread:$0]  (%p429), %s434, %s437, %s436, %s414, 128, 128, 8
        $region48: #{tpu_custom_call.1} parent=39 // pred_fallthru
          _
      $region40: #{tpu_custom_call.1} parent=5 // pred_fallthru
        _
      %p442 = scmp.le.s32.totalorder 2, %s15
      // Predicated region
      $region49: #{tpu_custom_call.1} parent=5 // pred_check
        %p443 = pneg %p442
      $region50: #{tpu_custom_call.1} parent=5 // pred_check_branch
        %445 = sbr.rel (%p443) target = $region52
      $region51: #{tpu_custom_call.1} parent=5 // pred_region
        %s446 = ssub.s32 %s15, 2
        // Predicated region
        $region53: #{tpu_custom_call.1} parent=51 // pred_check
          %p447 = pneg %p154
        $region54: #{tpu_custom_call.1} parent=51 // pred_check_branch
          %449 = sbr.rel (%p447) target = $region56
        $region55: #{tpu_custom_call.1} parent=51 // pred_region
          %s450 = sand.u32 %s139, 1
          %s451 = scalar_lea.sflag [#allocation4], %s450
          %s452 = sand.u32 %s139, 1
          %s453 = smul.addr %s452, 24
          %s454 = scalar_lea.vmem [#allocation5], %s453
          %456 = dma.done %s451, 384
        $region56: #{tpu_custom_call.1} parent=51 // pred_fallthru
          _
      $region52: #{tpu_custom_call.1} parent=5 // pred_fallthru
        _
    $region6: #{tpu_custom_call.1} parent=1 // loop_footer
      %s19 = sadd.s32 1, %s15
    $region7: #{tpu_custom_call.1} parent=1 // loop_footer_branch
      %14 = sbr.rel target = $region3
    $region8: #{tpu_custom_call.1} parent=1 // loop_exit
      _
    %457 = vsyncpa [#allocation3], 1
    %s458 = scalar_lea.sflag [#allocation3], 1
    %459 = vsyncpa %s458, 1
    %460 = vsyncpa [#allocation4], 1
    %s461 = scalar_lea.sflag [#allocation4], 1
    %462 = vsyncpa %s461, 1

// kernel: tpu_custom_call.1
$region0: #{tpu_custom_call.1}
  #allocation0 [shape = 'u32[]', space=smem, size = 0x4, offset = 0x4, fixed_abs, tag = 'smem constant byte address 0x4 - core index']
  #allocation1 [shape = 'u32[72,128]{1,0:T(1,128)}', space=vmem, size = 0x9000, scoped, tag = 'internal scratch']
  %s0 = inlined_call_operand.vmem [shape: f32[33,13], index: 0, kind: input, shape index: {}]
  %s1 = inlined_call_operand.vmem [shape: bf16[13,128], index: 1, kind: input, shape index: {}]
  %s2 = inlined_call_operand.vmem [shape: f32[1,128], index: 2, kind: input, shape index: {}]
  %s3 = inlined_call_operand.hbm [shape: bf16[128,128], index: 3, kind: input, shape index: {}]
  %s4 = inlined_call_operand.vmem [shape: f32[1,128], index: 4, kind: input, shape index: {}]
  %s5 = inlined_call_operand.hbm [shape: f32[33,128], index: 5, kind: output, shape index: {}]
  %s6 = sld [smem:[#allocation0]]
  $region57: #{tpu_custom_call.1} parent=0
    _
  %s8 = ssub.s32 1, %s6
  %s9 = scalar_select 0, %s8, %s6
  $region1: #{tpu_custom_call.1} parent=0
    #allocation2 [shape = 'u8[32768]{0}', space=vmem, size = 0x8000, scoped, tag = 'input window, operand 3, single buffered']
    #allocation3 [shape = 's32[2]{0}', space=sflag, size = 0x8, scoped, tag = 'scoped memory for tpu_custom_call.1']
    #allocation4 [shape = 's32[2]{0}', space=sflag, size = 0x8, scoped, tag = 'scoped memory for tpu_custom_call.1']
    #allocation5 [shape = 'u8[24576]{0}', space=vmem, size = 0x6000, scoped, tag = 'output window, operand 0']
    %10 = vsyncpa [#allocation3], 0
    %11 = vsyncpa [#allocation4], 0
    %s12 = scalar_lea.sflag [#allocation4], 1
    %13 = vsyncpa %s12, 0
    loop: start=0, step=1, limit=4
    $region2: #{tpu_custom_call.1} parent=1 // loop_pre_header
      _
    $region3: #{tpu_custom_call.1} parent=1 // loop_header
      %s15 = sphi 0, %s19
      %p16 = scmp.ge.s32.totalorder %s15, 4
      %s25 = sphi 0, %s27
      %s28 = sphi 0, %s25
      %s29 = sphi 0, %s28
      %s45 = sphi 0, %s29
      %s49 = sphi 0, %s49
      %s51 = sphi 0, %s49
      %s52 = sphi 0, %s51
      %s66 = sphi 0, %s52
      %s70 = sphi 0, %s70
      %s72 = sphi 0, %s70
      %s73 = sphi 0, %s72
      %s87 = sphi 0, %s73
      %s91 = sphi 0, %s91
      %s93 = sphi 0, %s91
      %s94 = sphi 0, %s93
      %s108 = sphi 0, %s94
      %s112 = sphi 0, %s112
      %s114 = sphi 0, %s112
      %s115 = sphi 0, %s114
      %s129 = sphi 0, %s115
      %s135 = sphi 0, %s137
      %s138 = sphi 0, %s135
      %s139 = sphi 0, %s138
      %s155 = sphi 0, %s139
    $region4: #{tpu_custom_call.1} parent=1 // loop_header_branch
      %18 = sbr.rel (%p16) target = $region8
    $region5: #{tpu_custom_call.1} parent=1 // loop_body
      %s20 = ssub.s32 %s15, 1
      %s21 = ssub.s32 %s15, 2
      %s22 = sadd.s32 %s15, 1
      %s23 = ssub.s32 %s15, %s22
      %p24 = scmp.eq.s32.totalorder %s23, 0
      %s26 = sadd.s32 %s25, 1
      %s27 = scalar_select %p24, %s25, %s26
      %p30 = pneg %p24
      %p31 = scmp.eq.s32.totalorder %s15, 1
      %p32 = por %p30, %p31
      %p33 = scmp.ne.s32.totalorder %s25, %s28
      %p34 = scmp.eq.s32.totalorder %s15, 0
      %p35 = por %p33, %p34
      %p36 = scmp.ne.s32.totalorder %s25, %s28
      %p37 = scmp.eq.s32.totalorder %s20, 1
      %p38 = por %p36, %p37
      %p39 = scmp.ne.s32.totalorder %s28, %s29
      %p40 = scmp.eq.s32.totalorder %s20, 0
      %p41 = por %p39, %p40
      %p42 = scmp.ne.s32.totalorder %s28, %s29
      %p43 = scmp.eq.s32.totalorder %s21, 1
      %p44 = por %p42, %p43
      %p46 = scmp.ne.s32.totalorder %s29, %s45
      %p47 = scmp.eq.s32.totalorder %s21, 0
      %p48 = por %p46, %p47
      %s50 = sadd.s32 %s49, 1
      %p53 = scmp.eq.s32.totalorder %s15, 1
      %p54 = scmp.ne.s32.totalorder %s49, %s51
      %p55 = scmp.eq.s32.totalorder %s15, 0
      %p56 = por %p54, %p55
      %p57 = scmp.ne.s32.totalorder %s49, %s51
      %p58 = scmp.eq.s32.totalorder %s20, 1
      %p59 = por %p57, %p58
      %p60 = scmp.ne.s32.totalorder %s51, %s52
      %p61 = scmp.eq.s32.totalorder %s20, 0
      %p62 = por %p60, %p61
      %p63 = scmp.ne.s32.totalorder %s51, %s52
      %p64 = scmp.eq.s32.totalorder %s21, 1
      %p65 = por %p63, %p64
      %p67 = scmp.ne.s32.totalorder %s52, %s66
      %p68 = scmp.eq.s32.totalorder %s21, 0
      %p69 = por %p67, %p68
      %s71 = sadd.s32 %s70, 1
      %p74 = scmp.eq.s32.totalorder %s15, 1
      %p75 = scmp.ne.s32.totalorder %s70, %s72
      %p76 = scmp.eq.s32.totalorder %s15, 0
      %p77 = por %p75, %p76
      %p78 = scmp.ne.s32.totalorder %s70, %s72
      %p79 = scmp.eq.s32.totalorder %s20, 1
      %p80 = por %p78, %p79
      %p81 = scmp.ne.s32.totalorder %s72, %s73
      %p82 = scmp.eq.s32.totalorder %s20, 0
      %p83 = por %p81, %p82
      %p84 = scmp.ne.s32.totalorder %s72, %s73
      %p85 = scmp.eq.s32.totalorder %s21, 1
      %p86 = por %p84, %p85
      %p88 = scmp.ne.s32.totalorder %s73, %s87
      %p89 = scmp.eq.s32.totalorder %s21, 0
      %p90 = por %p88, %p89
      %s92 = sadd.s32 %s91, 1
      %p95 = scmp.eq.s32.totalorder %s15, 1
      %p96 = scmp.ne.s32.totalorder %s91, %s93
      %p97 = scmp.eq.s32.totalorder %s15, 0
      %p98 = por %p96, %p97
      %p99 = scmp.ne.s32.totalorder %s91, %s93
      %p100 = scmp.eq.s32.totalorder %s20, 1
      %p101 = por %p99, %p100
      %p102 = scmp.ne.s32.totalorder %s93, %s94
      %p103 = scmp.eq.s32.totalorder %s20, 0
      %p104 = por %p102, %p103
      %p105 = scmp.ne.s32.totalorder %s93, %s94
      %p106 = scmp.eq.s32.totalorder %s21, 1
      %p107 = por %p105, %p106
      %p109 = scmp.ne.s32.totalorder %s94, %s108
      %p110 = scmp.eq.s32.totalorder %s21, 0
      %p111 = por %p109, %p110
      %s113 = sadd.s32 %s112, 1
      %p116 = scmp.eq.s32.totalorder %s15, 1
      %p117 = scmp.ne.s32.totalorder %s112, %s114
      %p118 = scmp.eq.s32.totalorder %s15, 0
      %p119 = por %p117, %p118
      %p120 = scmp.ne.s32.totalorder %s112, %s114
      %p121 = scmp.eq.s32.totalorder %s20, 1
      %p122 = por %p120, %p121
      %p123 = scmp.ne.s32.totalorder %s114, %s115
      %p124 = scmp.eq.s32.totalorder %s20, 0
      %p125 = por %p123, %p124
      %p126 = scmp.ne.s32.totalorder %s114, %s115
      %p127 = scmp.eq.s32.totalorder %s21, 1
      %p128 = por %p126, %p127
      %p130 = scmp.ne.s32.totalorder %s115, %s129
      %p131 = scmp.eq.s32.totalorder %s21, 0
      %p132 = por %p130, %p131
      %s133 = ssub.s32 %s15, %s22
      %p134 = scmp.eq.s32.totalorder %s133, 0
      %s136 = sadd.s32 %s135, 1
      %s137 = scalar_select %p134, %s135, %s136
      %p140 = pneg %p134
      %p141 = scmp.eq.s32.totalorder %s15, 1
      %p142 = por %p140, %p141
      %p143 = scmp.ne.s32.totalorder %s135, %s138
      %p144 = scmp.eq.s32.totalorder %s15, 0
      %p145 = por %p143, %p144
      %p146 = scmp.ne.s32.totalorder %s135, %s138
      %p147 = scmp.eq.s32.totalorder %s20, 1
      %p148 = por %p146, %p147
      %p149 = scmp.ne.s32.totalorder %s138, %s139
      %p150 = scmp.eq.s32.totalorder %s20, 0
      %p151 = por %p149, %p150
      %p152 = scmp.ne.s32.totalorder %s138, %s139
      %p153 = scmp.eq.s32.totalorder %s21, 1
      %p154 = por %p152, %p153
      %p156 = scmp.ne.s32.totalorder %s139, %s155
      %p157 = scmp.eq.s32.totalorder %s21, 0
      %p158 = por %p156, %p157
      %p159 = scmp.le.s32.totalorder 1, %s15
      %p160 = scmp.lt.s32.totalorder %s15, 3
      %p161 = pnand %p159, %p160
      %p162 = pneg %p161
      // Predicated region
      $region9: #{tpu_custom_call.1} parent=5 // pred_check
        _
      $region10: #{tpu_custom_call.1} parent=5 // pred_check_branch
        %164 = sbr.rel (%p161) target = $region12
      $region11: #{tpu_custom_call.1} parent=5 // pred_region
        %s165 = ssub.s32 %s15, 1
        // Predicated region
        $region13: #{tpu_custom_call.1} parent=11 // pred_check
          %p166 = pneg %p62
        $region14: #{tpu_custom_call.1} parent=11 // pred_check_branch
          %168 = sbr.rel (%p166) target = $region16
        $region15: #{tpu_custom_call.1} parent=11 // pred_region
          _
        $region16: #{tpu_custom_call.1} parent=11 // pred_fallthru
          _
        // Predicated region
        $region17: #{tpu_custom_call.1} parent=11 // pred_check
          %p169 = pneg %p83
        $region18: #{tpu_custom_call.1} parent=11 // pred_check_branch
          %171 = sbr.rel (%p169) target = $region20
        $region19: #{tpu_custom_call.1} parent=11 // pred_region
          _
        $region20: #{tpu_custom_call.1} parent=11 // pred_fallthru
          _
        // Predicated region
        $region21: #{tpu_custom_call.1} parent=11 // pred_check
          %p172 = pneg %p104
        $region22: #{tpu_custom_call.1} parent=11 // pred_check_branch
          %174 = sbr.rel (%p172) target = $region24
        $region23: #{tpu_custom_call.1} parent=11 // pred_region
          %176 = vsyncadd [#allocation3], 0
          %s177 = sshll.u32 %s3, 4
          %s178 = int_to_ptr.hbm [resolvable:$true] %s177
          %s179 = sshll.u32 [#allocation2], 4
          %s180 = int_to_ptr.vmem [resolvable:$true] %s179
          %185 = dma.hbm_to_vmem [thread:$0]  %s178, 1024, %s180, [#allocation3], 64, 64, 4
        $region24: #{tpu_custom_call.1} parent=11 // pred_fallthru
          _
        // Predicated region
        $region25: #{tpu_custom_call.1} parent=11 // pred_check
          %p186 = pneg %p125
        $region26: #{tpu_custom_call.1} parent=11 // pred_check_branch
          %188 = sbr.rel (%p186) target = $region28
        $region27: #{tpu_custom_call.1} parent=11 // pred_region
          _
        $region28: #{tpu_custom_call.1} parent=11 // pred_fallthru
          _
      $region12: #{tpu_custom_call.1} parent=5 // pred_fallthru
        _
      %p189 = scmp.lt.s32.totalorder %s15, 2
      // Predicated region
      $region29: #{tpu_custom_call.1} parent=5 // pred_check
        %p190 = pneg %p189
      $region30: #{tpu_custom_call.1} parent=5 // pred_check_branch
        %192 = sbr.rel (%p190) target = $region32
      $region31: #{tpu_custom_call.1} parent=5 // pred_region
        // Predicated region
        $region33: #{tpu_custom_call.1} parent=31 // pred_check
          %p193 = pneg %p35
        $region34: #{tpu_custom_call.1} parent=31 // pred_check_branch
          %195 = sbr.rel (%p193) target = $region36
        $region35: #{tpu_custom_call.1} parent=31 // pred_region
          %s196 = smul.u32 3, %s15
          %s197 = ssub.s32 5, %s196
          %p198 = scmp.lt.s32.totalorder %s197, 3
          %s199 = scalar_select %p198, %s197, 3
          %s200 = smul.u32 8, %s199
          %p201 = scmp.lt.s32.totalorder %s196, 4
          %s202 = scalar_select %p201, %s196, 4
          %s203 = smul.addr %s202, 8
          %s204 = scalar_lea.vmem %s0, %s203
          %s205 = smul.u32 3, %s15
          %s206 = ssub.s32 5, %s205
          %p207 = scmp.lt.s32.totalorder %s206, 3
          %s208 = scalar_select %p207, %s206, 3
          %s209 = smul.u32 8, %s208
        $region36: #{tpu_custom_call.1} parent=31 // pred_fallthru
          _
      $region32: #{tpu_custom_call.1} parent=5 // pred_fallthru
        _
      %p210 = scmp.le.s32.totalorder 1, %s15
      %p211 = scmp.lt.s32.totalorder %s15, 3
      %p212 = pnand %p210, %p211
      %p213 = pneg %p212
      // Predicated region
      $region37: #{tpu_custom_call.1} parent=5 // pred_check
        _
      $region38: #{tpu_custom_call.1} parent=5 // pred_check_branch
        %215 = sbr.rel (%p212) target = $region40
      $region39: #{tpu_custom_call.1} parent=5 // pred_region
        %s216 = ssub.s32 %s15, 1
        // Predicated region
        $region41: #{tpu_custom_call.1} parent=39 // pred_check
          %p217 = pneg %p104
        $region42: #{tpu_custom_call.1} parent=39 // pred_check_branch
          %219 = sbr.rel (%p217) target = $region44
        $region43: #{tpu_custom_call.1} parent=39 // pred_region
          %221 = dma.done [#allocation3], 1024
        $region44: #{tpu_custom_call.1} parent=39 // pred_fallthru
          _
        %s222 = smul.u32 3, %s20
        %s223 = ssub.s32 5, %s222
        %p224 = scmp.lt.s32.totalorder %s223, 3
        %s225 = scalar_select %p224, %s223, 3
        %s226 = smul.u32 8, %s225
        %p227 = scmp.lt.s32.totalorder %s222, 4
        %s228 = scalar_select %p227, %s222, 4
        %s229 = smul.addr %s228, 8
        %s230 = scalar_lea.vmem %s0, %s229
        %p231 = pneg %p41
        %p232 = pneg %p38
        %p233 = pneg %p62
        %p234 = pneg %p59
        %p235 = pneg %p83
        %p236 = pneg %p80
        %p237 = pneg %p104
        %p238 = pneg %p101
        %p239 = pneg %p125
        %p240 = pneg %p122
        %p241 = pneg %p151
        %p242 = pneg %p148
        %s243 = sand.u32 %s138, 1
        %s244 = scalar_lea.sflag [#allocation4], %s243
        %s245 = sand.u32 %s138, 1
        %s246 = smul.addr %s245, 24
        %s247 = scalar_lea.vmem [#allocation5], %s246
        %s248 = smul.u32 3, %s20
        %s249 = ssub.s32 5, %s248
        %p250 = scmp.lt.s32.totalorder %s249, 3
        %s251 = scalar_select %p250, %s249, 3
        %s252 = smul.u32 8, %s251
        %p253 = scmp.lt.s32.totalorder %s248, 4
        %s254 = scalar_select %p253, %s248, 4
        %s255 = smul.addr %s254, 8
        %s256 = scalar_lea.vmem %s0, %s255
        %s257 = smul.u32 3, %s20
        %s258 = ssub.s32 5, %s257
        %p259 = scmp.lt.s32.totalorder %s258, 3
        %s260 = scalar_select %p259, %s258, 3
        %s261 = smul.u32 8, %s260
        %s262 = smul.u32 3, %s20
        %s263 = ssub.s32 5, %s262
        %p264 = scmp.lt.s32.totalorder %s263, 3
        %s265 = scalar_select %p264, %s263, 3
        %s266 = smul.u32 8, %s265
        %v268 = vld [vmem:[%s256] sm:$0xff]
        %v269 = vld [vmem:[%s256 + $0x8] sm:$0xff]
        %v270 = vld [vmem:[%s256 + $0x10] sm:$0xff]
        %v271 = vpack.c.bf16 %v269, %v268
        %v272 = vpack.c.bf16 %v270, %v270
        %v273 = vld [vmem:[%s1] sm:$0xf]
        %v274 = vld [vmem:[%s1 + $0x4] sm:$0x7]
        %v275 = vld [vmem:[%s2] sm:$0x1]
        %v277 = vperm.slane %v275, 0
        %v281 = vunpack.c.l.b16 %v273
        %v282 = vunpack.c.l.b16 %v274
        %v283 = vpack.c.b16 %v282, %v281
        %vm284 = vcmask 105472
        %v286 = vsel %vm284, %v271, 0
        %v289 = vsel %vm284, %v272, 0
        %vm291 = vcmask 1045504
        %vm292 = vcmask 1046528
        %v293 = vsel %vm291, 4294967295, 65535
        %v294 = vsel %vm292, %v293, 0
        %v296 = vand.u32 %v283, %v294
        %298 = vmatpush.bf16.msra.mxu0 0
        %299 = vmatpush.bf16.msra.mxu0 0
        %300 = vmatpush.bf16.msra.mxu0 0
        %301 = vmatpush.bf16.msra.mxu0 0
        %302 = vmatpush.bf16.msra.mxu0 0
        %303 = vmatpush.bf16.msra.mxu0 0
        %304 = vmatpush.bf16.msra.mxu0 0
        %305 = vmatpush.bf16.msra.mxu0 %v296
        %306 = vmatmul.bf16.gmra.mxu0 %v286
        %v307 = vpop.f32.mrf.mxu0
        %v308 = vadd.f32 %v277, %v307
        %v309 = vpop.f32.mrf.mxu0
        %v310 = vadd.f32 %v277, %v309
        %311 = vmatmul.bf16.gmra.mxu0 %v289
        %v312 = vpop.f32.mrf.mxu0
        %v313 = vadd.f32 %v277, %v312
        %v314 = vpop.f32.mrf.mxu0
        %315 = vdwg.mxu0
        %v316 = vmax.f32 %v308, 0.0
        %v317 = vmax.f32 %v310, 0.0
        %v318 = vmax.f32 %v313, 0.0
        %v319 = vpack.c.bf16 %v317, %v316
        %v320 = vpack.c.bf16 %v318, %v318
        %v321 = vld [vmem:[#allocation2] sm:$0xf]
        %v322 = vld [vmem:[#allocation2 + $0x4] sm:$0xf]
        %v323 = vld [vmem:[#allocation2 + $0x8] sm:$0xf]
        %v324 = vld [vmem:[#allocation2 + $0xc] sm:$0xf]
        %v325 = vld [vmem:[#allocation2 + $0x10] sm:$0xf]
        %v326 = vld [vmem:[#allocation2 + $0x14] sm:$0xf]
        %v327 = vld [vmem:[#allocation2 + $0x18] sm:$0xf]
        %v328 = vld [vmem:[#allocation2 + $0x1c] sm:$0xf]
        %v329 = vld [vmem:[#allocation2 + $0x20] sm:$0xf]
        %v330 = vld [vmem:[#allocation2 + $0x24] sm:$0xf]
        %v331 = vld [vmem:[#allocation2 + $0x28] sm:$0xf]
        %v332 = vld [vmem:[#allocation2 + $0x2c] sm:$0xf]
        %v333 = vld [vmem:[#allocation2 + $0x30] sm:$0xf]
        %v334 = vld [vmem:[#allocation2 + $0x34] sm:$0xf]
        %v335 = vld [vmem:[#allocation2 + $0x38] sm:$0xf]
        %v336 = vld [vmem:[#allocation2 + $0x3c] sm:$0xf]
        %v337 = vld [vmem:[%s4] sm:$0x1]
        %v339 = vperm.slane %v337, 0
        %v357 = vunpack.c.l.b16 %v321
        %v358 = vunpack.c.l.b16 %v322
        %v359 = vunpack.c.l.b16 %v323
        %v360 = vunpack.c.l.b16 %v324
        %v361 = vunpack.c.l.b16 %v325
        %v362 = vunpack.c.l.b16 %v326
        %v363 = vunpack.c.l.b16 %v327
        %v364 = vunpack.c.l.b16 %v328
        %v365 = vunpack.c.l.b16 %v329
        %v366 = vunpack.c.l.b16 %v330
        %v367 = vunpack.c.l.b16 %v331
        %v368 = vunpack.c.l.b16 %v332
        %v369 = vunpack.c.l.b16 %v333
        %v370 = vunpack.c.l.b16 %v334
        %v371 = vunpack.c.l.b16 %v335
        %v372 = vunpack.c.l.b16 %v336
        %v373 = vpack.c.b16 %v358, %v357
        %v374 = vpack.c.b16 %v360, %v359
        %v375 = vpack.c.b16 %v362, %v361
        %v376 = vpack.c.b16 %v364, %v363
        %v377 = vpack.c.b16 %v366, %v365
        %v378 = vpack.c.b16 %v368, %v367
        %v379 = vpack.c.b16 %v370, %v369
        %v380 = vpack.c.b16 %v372, %v371
        %389 = vmatpush.bf16.msra.mxu0 %v380
        %390 = vmatpush.bf16.msra.mxu0 %v379
        %391 = vmatpush.bf16.msra.mxu0 %v378
        %392 = vmatpush.bf16.msra.mxu0 %v377
        %393 = vmatpush.bf16.msra.mxu0 %v376
        %394 = vmatpush.bf16.msra.mxu0 %v375
        %395 = vmatpush.bf16.msra.mxu0 %v374
        %396 = vmatpush.bf16.msra.mxu0 %v373
        %397 = vmatmul.bf16.gmra.mxu0 %v319
        %v398 = vpop.f32.mrf.mxu0
        %v399 = vadd.f32 %v339, %v398
        %v400 = vpop.f32.mrf.mxu0
        %v401 = vadd.f32 %v339, %v400
        %402 = vmatmul.bf16.gmra.mxu0 %v320
        %v403 = vpop.f32.mrf.mxu0
        %v404 = vadd.f32 %v339, %v403
        %v405 = vpop.f32.mrf.mxu0
        %406 = vdwg.mxu0
        %v407 = vmax.f32 %v399, 0.0
        %v408 = vmax.f32 %v401, 0.0
        %v409 = vmax.f32 %v404, 0.0
        %410 = vst [vmem:[%s247] sm:$0xff] %v407
        %411 = vst [vmem:[%s247 + $0x8] sm:$0xff] %v408
        %412 = vst [vmem:[%s247 + $0x10] sm:$0xff] %v409
        %s413 = sand.u32 %s138, 1
        %s414 = scalar_lea.sflag [#allocation4], %s413
        %s415 = sand.u32 %s138, 1
        %s416 = smul.addr %s415, 24
        %s417 = scalar_lea.vmem [#allocation5], %s416
        // Predicated region
        $region45: #{tpu_custom_call.1} parent=39 // pred_check
          %p418 = pneg %p148
        $region46: #{tpu_custom_call.1} parent=39 // pred_check_branch
          %420 = sbr.rel (%p418) target = $region48
        $region47: #{tpu_custom_call.1} parent=39 // pred_region
          %s421 = smul.u32 3, %s20
          %s422 = ssub.s32 5, %s421
          %p423 = scmp.lt.s32.totalorder %s422, 3
          %s424 = scalar_select %p423, %s422, 3
          %s425 = smul.u32 8, %s424
          %s426 = ssub.s32 24, %s425
          %s427 = sshll.u32 %s426, 4
          %428 = vsyncadd %s414, %s427
          %p429 = scmp.ne.s32.totalorder 0, %s425
          %s430 = smul.addr %s421, 8
          %s431 = scalar_lea.hbm %s5, %s430
          %s432 = smul.u32 8, %s424
          %s433 = sshll.u32 %s417, 4
          %s434 = int_to_ptr.vmem [resolvable:$true] %s433
          %s435 = sshll.u32 %s431, 4
          %s436 = int_to_ptr.hbm [resolvable:$true] %s435
          %s437 = sshll.u32 %s432, 4
          %441 = dma.vmem_to_hbm [thread:$0]  (%p429), %s434, %s437, %s436, %s414, 128, 128, 8
        $region48: #{tpu_custom_call.1} parent=39 // pred_fallthru
          _
      $region40: #{tpu_custom_call.1} parent=5 // pred_fallthru
        _
      %p442 = scmp.le.s32.totalorder 2, %s15
      // Predicated region
      $region49: #{tpu_custom_call.1} parent=5 // pred_check
        %p443 = pneg %p442
      $region50: #{tpu_custom_call.1} parent=5 // pred_check_branch
        %445 = sbr.rel (%p443) target = $region52
      $region51: #{tpu_custom_call.1} parent=5 // pred_region
        %s446 = ssub.s32 %s15, 2
        // Predicated region
        $region53: #{tpu_custom_call.1} parent=51 // pred_check
          %p447 = pneg %p154
        $region54: #{tpu_custom_call.1} parent=51 // pred_check_branch
          %449 = sbr.rel (%p447) target = $region56
        $region55: #{tpu_custom_call.1} parent=51 // pred_region
          %s450 = sand.u32 %s139, 1
          %s451 = scalar_lea.sflag [#allocation4], %s450
          %s452 = sand.u32 %s139, 1
          %s453 = smul.addr %s452, 24
          %s454 = scalar_lea.vmem [#allocation5], %s453
          %456 = dma.done %s451, 384
        $region56: #{tpu_custom_call.1} parent=51 // pred_fallthru
          _
      $region52: #{tpu_custom_call.1} parent=5 // pred_fallthru
        _
    $region6: #{tpu_custom_call.1} parent=1 // loop_footer
      %s19 = sadd.s32 1, %s15
    $region7: #{tpu_custom_call.1} parent=1 // loop_footer_branch
      %14 = sbr.rel target = $region3
    $region8: #{tpu_custom_call.1} parent=1 // loop_exit
      _
    %457 = vsyncpa [#allocation3], 1
    %s458 = scalar_lea.sflag [#allocation3], 1
    %459 = vsyncpa %s458, 1
    %460 = vsyncpa [#allocation4], 1
    %s461 = scalar_lea.sflag [#allocation4], 1
    %462 = vsyncpa %s461, 1

</llo_original>
